<compile_context>
chip_gen: v5e
topology: v5e:2x2
jax: 0.10.0
libtpu: 0.0.40
codegen_flags: <defaults>
</compile_context>

<pallas_src>
import functools

import jax
import jax.numpy as jnp
from jax.experimental import pallas as pl
from jax.experimental.pallas import tpu as pltpu

LANE = 128          # TPU vreg lane width
H1, H2 = 25, 12     # hidden widths of the PyTorch module
_EPS = 1e-5


def _round_up8(n):
    return (n + 7) // 8 * 8


def _bn_relu(h, gamma, beta, eps=_EPS):
    # BatchNorm1d (training mode: batch mean, biased batch variance) + ReLU.
    m = jnp.mean(h, axis=0, keepdims=True)
    d = h - m
    v = jnp.mean(d * d, axis=0, keepdims=True)
    return jnp.maximum(d * jax.lax.rsqrt(v + eps) * gamma + beta, 0.0)


def _nn_kernel(x_ref, p_ref, o_ref, *, n_x, n_x_pad, n_y):
    x = x_ref[...]
    if x.dtype != jnp.float32:          # skip the cast when already f32
        x = x.astype(jnp.float32)

    # Static slices of the single packed parameter tile (zero runtime cost).
    w1 = p_ref[0:n_x, :]
    w2 = p_ref[n_x_pad:n_x_pad + LANE, :]
    w3 = p_ref[n_x_pad + LANE:n_x_pad + 2 * LANE, :]
    v0 = n_x_pad + 2 * LANE
    g1 = p_ref[v0 + 0:v0 + 1, :]
    be1 = p_ref[v0 + 1:v0 + 2, :]
    g2 = p_ref[v0 + 2:v0 + 3, :]
    be2 = p_ref[v0 + 3:v0 + 4, :]
    b3 = p_ref[v0 + 4:v0 + 5, :]

    # Layer 1: Linear (bias omitted: exactly cancelled by BN mean) -> BN -> ReLU
    h = jnp.dot(x, w1, preferred_element_type=jnp.float32)
    h = _bn_relu(h, g1, be1)

    # Layer 2: Linear (bias omitted) -> BN -> ReLU
    h = jnp.dot(h, w2, preferred_element_type=jnp.float32)
    h = _bn_relu(h, g2, be2)

    # Layer 3: Linear with bias (logits); direct (B, n_y) store.
    o = jnp.dot(h, w3, preferred_element_type=jnp.float32) + b3
    o_ref[...] = o[:, :n_y].astype(o_ref.dtype)


def init_params(key, n_x, n_y, dtype=jnp.float32):
    """Parameter init mirroring the PyTorch layer shapes.
    Linear weights are stored transposed: (in_features, out_features)."""
    dims = [(n_x, H1), (H1, H2), (H2, n_y)]
    params = {}
    keys = jax.random.split(key, 2 * len(dims))
    for i, (fan_in, fan_out) in enumerate(dims):
        bound = 1.0 / (fan_in ** 0.5)
        params[f"w{i+1}"] = jax.random.uniform(
            keys[2 * i], (fan_in, fan_out), dtype, -bound, bound)
        params[f"b{i+1}"] = jax.random.uniform(
            keys[2 * i + 1], (1, fan_out), dtype, -bound, bound)
    # BatchNorm affine params (PyTorch default init: gamma=1, beta=0)
    params["g1"] = jnp.ones((1, H1), dtype)
    params["be1"] = jnp.zeros((1, H1), dtype)
    params["g2"] = jnp.ones((1, H2), dtype)
    params["be2"] = jnp.zeros((1, H2), dtype)
    return params


def pack_params(params, n_x):
    """Pack every parameter into ONE zero-padded (n_x_pad + 264, 128) f32 tile.

    Layout (rows):
      [0            : n_x)            w1   (n_x, 25)  -> lanes 0:25
      [n_x_pad      : n_x_pad+128)    w2   (25, 12)   -> lanes 0:12
      [n_x_pad+128  : n_x_pad+256)    w3   (12, n_y)  -> lanes 0:n_y
      [n_x_pad+256  : +8)             g1, be1, g2, be2, b3 (one row each)

    b1/b2 are intentionally NOT packed (cancelled by training-mode BN).
    Call this ONCE, outside the jitted forward (params are static per model).
    """
    n_y = params["w3"].shape[1]
    n_x_pad = _round_up8(n_x)
    rows = n_x_pad + 2 * LANE + 8
    p = jnp.zeros((rows, LANE), jnp.float32)
    p = p.at[0:n_x, 0:H1].set(params["w1"].astype(jnp.float32))
    p = p.at[n_x_pad:n_x_pad + H1, 0:H2].set(params["w2"].astype(jnp.float32))
    p = p.at[n_x_pad + LANE:n_x_pad + LANE + H2, 0:n_y].set(
        params["w3"].astype(jnp.float32))
    v0 = n_x_pad + 2 * LANE
    p = p.at[v0 + 0, 0:H1].set(params["g1"].reshape(-1).astype(jnp.float32))
    p = p.at[v0 + 1, 0:H1].set(params["be1"].reshape(-1).astype(jnp.float32))
    p = p.at[v0 + 2, 0:H2].set(params["g2"].reshape(-1).astype(jnp.float32))
    p = p.at[v0 + 3, 0:H2].set(params["be2"].reshape(-1).astype(jnp.float32))
    p = p.at[v0 + 4, 0:n_y].set(params["b3"].reshape(-1).astype(jnp.float32))
    return p


def nn_forward(x, packed, *, n_x, n_y):
    """Forward pass using the pre-packed parameter tile (2 input DMAs total)."""
    B = x.shape[0]
    n_x_pad = _round_up8(n_x)
    kernel = functools.partial(_nn_kernel, n_x=n_x, n_x_pad=n_x_pad, n_y=n_y)
    vmem = pl.BlockSpec(memory_space=pltpu.MemorySpace.VMEM)
    return pl.pallas_call(
        kernel,
        out_shape=jax.ShapeDtypeStruct((B, n_y), jnp.float32),
        in_specs=[vmem, vmem],
        out_specs=vmem,
    )(x, packed)


def nn_forward_ref(x, params, eps=_EPS):
    """Pure-JAX reference with the *full* PyTorch semantics (incl. b1/b2)."""
    h = x @ params["w1"] + params["b1"]
    m = h.mean(0, keepdims=True)
    v = ((h - m) ** 2).mean(0, keepdims=True)
    h = jnp.maximum((h - m) / jnp.sqrt(v + eps) * params["g1"] + params["be1"], 0.0)
    h = h @ params["w2"] + params["b2"]
    m = h.mean(0, keepdims=True)
    v = ((h - m) ** 2).mean(0, keepdims=True)
    h = jnp.maximum((h - m) / jnp.sqrt(v + eps) * params["g2"] + params["be2"], 0.0)
    return h @ params["w3"] + params["b3"]


if __name__ == "__main__":
    # Small shapes consistent with the module: flattened 8x8 gesture images
    # (n_x = 64), 6 gesture classes (n_y = 6), batch = 8.
    B, n_x, n_y = 8, 64, 6

    key = jax.random.PRNGKey(0)
    k_param, k_x = jax.random.split(key)
    params = init_params(k_param, n_x, n_y)
    x = jax.random.normal(k_x, (B, n_x), jnp.float32)

    # Pack once, outside the jitted per-call path (params are static).
    packed = jax.block_until_ready(pack_params(params, n_x))

    fwd = jax.jit(functools.partial(nn_forward, n_x=n_x, n_y=n_y))
    out = jax.block_until_ready(fwd(x, packed))

    ref = nn_forward_ref(x, params)
    assert out.shape == (B, n_y), out.shape
    assert jnp.allclose(out, ref, atol=1e-4, rtol=1e-4), "mismatch vs JAX reference"

    print("KERNEL_OK")
</pallas_src>

<mosaic_0001>
module attributes {stable_mosaic.version = 11 : i64} {
  func.func @_nn_kernel(%arg0: memref<8x64xf32, #tpu.memory_space<vmem>>, %arg1: memref<328x128xf32, #tpu.memory_space<vmem>>, %arg2: memref<8x6xf32, #tpu.memory_space<vmem>>) attributes {dimension_semantics = [], scalar_prefetch = 0 : i64, scratch_operands = 0 : i64, tpu.core_type = #tpu.core_type<tc>} {
    %c0 = arith.constant 0 : index
    %c0_0 = arith.constant 0 : index
    %0 = vector.load %arg0[%c0, %c0_0] : memref<8x64xf32, #tpu.memory_space<vmem>>, vector<8x64xf32>
    %c0_1 = arith.constant 0 : index
    %c0_2 = arith.constant 0 : index
    %1 = vector.load %arg1[%c0_1, %c0_2] : memref<328x128xf32, #tpu.memory_space<vmem>>, vector<64x128xf32>
    %c64 = arith.constant 64 : index
    %c0_3 = arith.constant 0 : index
    %2 = vector.load %arg1[%c64, %c0_3] : memref<328x128xf32, #tpu.memory_space<vmem>>, vector<128x128xf32>
    %c192 = arith.constant 192 : index
    %c0_4 = arith.constant 0 : index
    %3 = vector.load %arg1[%c192, %c0_4] : memref<328x128xf32, #tpu.memory_space<vmem>>, vector<128x128xf32>
    %c320 = arith.constant 320 : index
    %c0_5 = arith.constant 0 : index
    %4 = vector.load %arg1[%c320, %c0_5] : memref<328x128xf32, #tpu.memory_space<vmem>>, vector<1x128xf32>
    %c321 = arith.constant 321 : index
    %c0_6 = arith.constant 0 : index
    %5 = vector.load %arg1[%c321, %c0_6] : memref<328x128xf32, #tpu.memory_space<vmem>>, vector<1x128xf32>
    %c322 = arith.constant 322 : index
    %c0_7 = arith.constant 0 : index
    %6 = vector.load %arg1[%c322, %c0_7] : memref<328x128xf32, #tpu.memory_space<vmem>>, vector<1x128xf32>
    %c323 = arith.constant 323 : index
    %c0_8 = arith.constant 0 : index
    %7 = vector.load %arg1[%c323, %c0_8] : memref<328x128xf32, #tpu.memory_space<vmem>>, vector<1x128xf32>
    %c324 = arith.constant 324 : index
    %c0_9 = arith.constant 0 : index
    %8 = vector.load %arg1[%c324, %c0_9] : memref<328x128xf32, #tpu.memory_space<vmem>>, vector<1x128xf32>
    %cst = arith.constant dense<0.000000e+00> : vector<8x128xf32>
    %9 = tpu.matmul %0, %1, %cst {dimension_numbers = #tpu.dot_dimension_numbers<[1], [0], [0], [1], [0, 0, 1, 1], [], []>} : vector<8x64xf32>, vector<64x128xf32>, vector<8x128xf32> -> vector<8x128xf32>
    %cst_10 = arith.constant dense<0.000000e+00> : vector<128xf32>
    %10 = vector.multi_reduction <add>, %9, %cst_10 [0] : vector<8x128xf32> to vector<128xf32>
    %11 = vector.shape_cast %10 : vector<128xf32> to vector<1x128xf32>
    %cst_11 = arith.constant 8.000000e+00 : f32
    %12 = vector.broadcast %cst_11 : f32 to vector<1x128xf32>
    %13 = arith.divf %11, %12 : vector<1x128xf32>
    %14 = vector.broadcast %13 : vector<1x128xf32> to vector<8x128xf32>
    %15 = arith.subf %9, %14 : vector<8x128xf32>
    %16 = arith.mulf %15, %15 : vector<8x128xf32>
    %cst_12 = arith.constant dense<0.000000e+00> : vector<128xf32>
    %17 = vector.multi_reduction <add>, %16, %cst_12 [0] : vector<8x128xf32> to vector<128xf32>
    %18 = vector.shape_cast %17 : vector<128xf32> to vector<1x128xf32>
    %cst_13 = arith.constant 8.000000e+00 : f32
    %19 = vector.broadcast %cst_13 : f32 to vector<1x128xf32>
    %20 = arith.divf %18, %19 : vector<1x128xf32>
    %cst_14 = arith.constant 9.99999974E-6 : f32
    %21 = vector.broadcast %cst_14 : f32 to vector<1x128xf32>
    %22 = arith.addf %20, %21 : vector<1x128xf32>
    %23 = math.rsqrt %22 : vector<1x128xf32>
    %24 = vector.broadcast %23 : vector<1x128xf32> to vector<8x128xf32>
    %25 = arith.mulf %15, %24 : vector<8x128xf32>
    %26 = vector.broadcast %4 : vector<1x128xf32> to vector<8x128xf32>
    %27 = arith.mulf %25, %26 : vector<8x128xf32>
    %28 = vector.broadcast %5 : vector<1x128xf32> to vector<8x128xf32>
    %29 = arith.addf %27, %28 : vector<8x128xf32>
    %cst_15 = arith.constant 0.000000e+00 : f32
    %30 = vector.broadcast %cst_15 : f32 to vector<8x128xf32>
    %31 = arith.maximumf %29, %30 : vector<8x128xf32>
    %cst_16 = arith.constant dense<0.000000e+00> : vector<8x128xf32>
    %32 = tpu.matmul %31, %2, %cst_16 {dimension_numbers = #tpu.dot_dimension_numbers<[1], [0], [0], [1], [0, 0, 1, 1], [], []>} : vector<8x128xf32>, vector<128x128xf32>, vector<8x128xf32> -> vector<8x128xf32>
    %cst_17 = arith.constant dense<0.000000e+00> : vector<128xf32>
    %33 = vector.multi_reduction <add>, %32, %cst_17 [0] : vector<8x128xf32> to vector<128xf32>
    %34 = vector.shape_cast %33 : vector<128xf32> to vector<1x128xf32>
    %cst_18 = arith.constant 8.000000e+00 : f32
    %35 = vector.broadcast %cst_18 : f32 to vector<1x128xf32>
    %36 = arith.divf %34, %35 : vector<1x128xf32>
    %37 = vector.broadcast %36 : vector<1x128xf32> to vector<8x128xf32>
    %38 = arith.subf %32, %37 : vector<8x128xf32>
    %39 = arith.mulf %38, %38 : vector<8x128xf32>
    %cst_19 = arith.constant dense<0.000000e+00> : vector<128xf32>
    %40 = vector.multi_reduction <add>, %39, %cst_19 [0] : vector<8x128xf32> to vector<128xf32>
    %41 = vector.shape_cast %40 : vector<128xf32> to vector<1x128xf32>
    %cst_20 = arith.constant 8.000000e+00 : f32
    %42 = vector.broadcast %cst_20 : f32 to vector<1x128xf32>
    %43 = arith.divf %41, %42 : vector<1x128xf32>
    %cst_21 = arith.constant 9.99999974E-6 : f32
    %44 = vector.broadcast %cst_21 : f32 to vector<1x128xf32>
    %45 = arith.addf %43, %44 : vector<1x128xf32>
    %46 = math.rsqrt %45 : vector<1x128xf32>
    %47 = vector.broadcast %46 : vector<1x128xf32> to vector<8x128xf32>
    %48 = arith.mulf %38, %47 : vector<8x128xf32>
    %49 = vector.broadcast %6 : vector<1x128xf32> to vector<8x128xf32>
    %50 = arith.mulf %48, %49 : vector<8x128xf32>
    %51 = vector.broadcast %7 : vector<1x128xf32> to vector<8x128xf32>
    %52 = arith.addf %50, %51 : vector<8x128xf32>
    %cst_22 = arith.constant 0.000000e+00 : f32
    %53 = vector.broadcast %cst_22 : f32 to vector<8x128xf32>
    %54 = arith.maximumf %52, %53 : vector<8x128xf32>
    %cst_23 = arith.constant dense<0.000000e+00> : vector<8x128xf32>
    %55 = tpu.matmul %54, %3, %cst_23 {dimension_numbers = #tpu.dot_dimension_numbers<[1], [0], [0], [1], [0, 0, 1, 1], [], []>} : vector<8x128xf32>, vector<128x128xf32>, vector<8x128xf32> -> vector<8x128xf32>
    %56 = vector.broadcast %8 : vector<1x128xf32> to vector<8x128xf32>
    %57 = arith.addf %55, %56 : vector<8x128xf32>
    %58 = vector.extract_strided_slice %57 {offsets = [0, 0], sizes = [8, 6], strides = [1, 1]} : vector<8x128xf32> to vector<8x6xf32>
    %c0_24 = arith.constant 0 : index
    %c0_25 = arith.constant 0 : index
    %59 = vector.load %arg2[%c0_24, %c0_25] : memref<8x6xf32, #tpu.memory_space<vmem>>, vector<8x6xf32>
    tpu.vector_store %arg2[%c0_24, %c0_25], %58 {strides = array<i32>} : memref<8x6xf32, #tpu.memory_space<vmem>>, vector<8x6xf32>,
    return
  }
}

</mosaic_0001>

<llo_original>
// kernel: nn_forward.1
$region0: #{nn_forward.1}
  #allocation0 [shape = 'u32[]', space=smem, size = 0x4, offset = 0x4, fixed_abs, tag = 'smem constant byte address 0x4 - core index']
  #allocation1 [shape = 'u32[72,128]{1,0:T(1,128)}', space=vmem, size = 0x9000, scoped, tag = 'internal scratch']
  %s0 = inlined_call_operand.hbm [shape: f32[8,64], index: 0, kind: input, shape index: {}]
  %s1 = inlined_call_operand.hbm [shape: f32[328,128], index: 1, kind: input, shape index: {}]
  %s2 = inlined_call_operand.hbm [shape: f32[8,6], index: 2, kind: output, shape index: {}]
  %s3 = sld [smem:[#allocation0]]
  $region26: #{nn_forward.1} parent=0
    _
  %s5 = ssub.s32 1, %s3
  %s6 = scalar_select 0, %s5, %s3
  $region1: #{nn_forward.1} parent=0
    #allocation2 [shape = 'u8[4096]{0}', space=vmem, size = 0x1000, scoped, tag = 'input window, operand 0, single buffered']
    #allocation3 [shape = 's32[1]{0}', space=sflag, size = 0x4, scoped, tag = 'scoped memory for nn_forward.1']
    #allocation4 [shape = 's32[1]{0}', space=sflag, size = 0x4, scoped, tag = 'scoped memory for nn_forward.1']
    #allocation5 [shape = 'u8[167936]{0}', space=vmem, size = 0x29000, scoped, tag = 'input window, operand 1, single buffered']
    #allocation6 [shape = 's32[1]{0}', space=sflag, size = 0x4, scoped, tag = 'scoped memory for nn_forward.1']
    #allocation7 [shape = 'u8[4096]{0}', space=vmem, size = 0x1000, scoped, tag = 'output window, operand 0, single buffered']
    %7 = vsyncpa [#allocation3], 0
    %8 = vsyncpa [#allocation6], 0
    %9 = vsyncpa [#allocation4], 0
    // Predicated region
    $region2: #{nn_forward.1} parent=1 // pred_check
      _
    $region3: #{nn_forward.1} parent=1 // pred_check_branch
      %11 = sbr.rel (0) target = $region5
    $region4: #{nn_forward.1} parent=1 // pred_region
      %13 = vsyncadd [#allocation3], 0
      %s15 = sshll.u32 %s0, 4
      %s16 = int_to_ptr.hbm [resolvable:$true] %s15
      %s17 = sshll.u32 [#allocation2], 4
      %s18 = int_to_ptr.vmem [resolvable:$true] %s17
      %20 = dma.hbm_to_vmem [thread:$0]  %s16, 128, %s18, [#allocation3]
    $region5: #{nn_forward.1} parent=1 // pred_fallthru
      _
    // Predicated region
    $region6: #{nn_forward.1} parent=1 // pred_check
      _
    $region7: #{nn_forward.1} parent=1 // pred_check_branch
      %22 = sbr.rel (0) target = $region9
    $region8: #{nn_forward.1} parent=1 // pred_region
      %24 = vsyncadd [#allocation6], 0
      %s25 = sshll.u32 %s1, 4
      %s26 = int_to_ptr.hbm [resolvable:$true] %s25
      %s27 = sshll.u32 [#allocation5], 4
      %s28 = int_to_ptr.vmem [resolvable:$true] %s27
      %33 = dma.hbm_to_vmem [thread:$0]  %s26, 5248, %s28, [#allocation6], 128, 128, 8
    $region9: #{nn_forward.1} parent=1 // pred_fallthru
      _
    // Predicated region
    $region10: #{nn_forward.1} parent=1 // pred_check
      _
    $region11: #{nn_forward.1} parent=1 // pred_check_branch
      %35 = sbr.rel (0) target = $region13
    $region12: #{nn_forward.1} parent=1 // pred_region
      %37 = dma.done [#allocation3], 128
    $region13: #{nn_forward.1} parent=1 // pred_fallthru
      _
    // Predicated region
    $region14: #{nn_forward.1} parent=1 // pred_check
      _
    $region15: #{nn_forward.1} parent=1 // pred_check_branch
      %39 = sbr.rel (0) target = $region17
    $region16: #{nn_forward.1} parent=1 // pred_region
      %41 = dma.done [#allocation6], 5248
    $region17: #{nn_forward.1} parent=1 // pred_fallthru
      _
    %v42 = vld [vmem:[#allocation2] sm:$0xff]
    %v43 = vld [vmem:[#allocation5] sm:$0xff]
    %v44 = vld [vmem:[#allocation5 + $0x8] sm:$0xff]
    %v45 = vld [vmem:[#allocation5 + $0x10] sm:$0xff]
    %v46 = vld [vmem:[#allocation5 + $0x18] sm:$0xff]
    %v47 = vld [vmem:[#allocation5 + $0x20] sm:$0xff]
    %v48 = vld [vmem:[#allocation5 + $0x28] sm:$0xff]
    %v49 = vld [vmem:[#allocation5 + $0x30] sm:$0xff]
    %v50 = vld [vmem:[#allocation5 + $0x38] sm:$0xff]
    %v51 = vld [vmem:[#allocation5 + $0x40] sm:$0xff]
    %v52 = vld [vmem:[#allocation5 + $0x48] sm:$0xff]
    %v53 = vld [vmem:[#allocation5 + $0x50] sm:$0xff]
    %v54 = vld [vmem:[#allocation5 + $0x58] sm:$0xff]
    %v55 = vld [vmem:[#allocation5 + $0x60] sm:$0xff]
    %v56 = vld [vmem:[#allocation5 + $0x68] sm:$0xff]
    %v57 = vld [vmem:[#allocation5 + $0x70] sm:$0xff]
    %v58 = vld [vmem:[#allocation5 + $0x78] sm:$0xff]
    %v59 = vld [vmem:[#allocation5 + $0x80] sm:$0xff]
    %v60 = vld [vmem:[#allocation5 + $0x88] sm:$0xff]
    %v61 = vld [vmem:[#allocation5 + $0x90] sm:$0xff]
    %v62 = vld [vmem:[#allocation5 + $0x98] sm:$0xff]
    %v63 = vld [vmem:[#allocation5 + $0xa0] sm:$0xff]
    %v64 = vld [vmem:[#allocation5 + $0xa8] sm:$0xff]
    %v65 = vld [vmem:[#allocation5 + $0xb0] sm:$0xff]
    %v66 = vld [vmem:[#allocation5 + $0xb8] sm:$0xff]
    %v67 = vld [vmem:[#allocation5 + $0xc0] sm:$0xff]
    %v68 = vld [vmem:[#allocation5 + $0xc8] sm:$0xff]
    %v69 = vld [vmem:[#allocation5 + $0xd0] sm:$0xff]
    %v70 = vld [vmem:[#allocation5 + $0xd8] sm:$0xff]
    %v71 = vld [vmem:[#allocation5 + $0xe0] sm:$0xff]
    %v72 = vld [vmem:[#allocation5 + $0xe8] sm:$0xff]
    %v73 = vld [vmem:[#allocation5 + $0xf0] sm:$0xff]
    %v74 = vld [vmem:[#allocation5 + $0xf8] sm:$0xff]
    %v75 = vld [vmem:[#allocation5 + $0x100] sm:$0xff]
    %v76 = vld [vmem:[#allocation5 + $0x108] sm:$0xff]
    %v77 = vld [vmem:[#allocation5 + $0x110] sm:$0xff]
    %v78 = vld [vmem:[#allocation5 + $0x118] sm:$0xff]
    %v79 = vld [vmem:[#allocation5 + $0x120] sm:$0xff]
    %v80 = vld [vmem:[#allocation5 + $0x128] sm:$0xff]
    %v81 = vld [vmem:[#allocation5 + $0x130] sm:$0xff]
    %v82 = vld [vmem:[#allocation5 + $0x138] sm:$0xff]
    %v83 = vld [vmem:[#allocation5 + $0x140] sm:$0x1]
    %v84 = vld [vmem:[#allocation5 + $0x141] sm:$0x1]
    %v85 = vld [vmem:[#allocation5 + $0x142] sm:$0x1]
    %v86 = vld [vmem:[#allocation5 + $0x143] sm:$0x1]
    %v87 = vld [vmem:[#allocation5 + $0x144] sm:$0x1]
    %vm88 = vcmask 523264
    %v90 = vsel %vm88, %v42, 0
    %92 = vmatpush.msra.mxu0 0.0
    %93 = vmatpush.msra.mxu0 0.0
    %94 = vmatpush.msra.mxu0 0.0
    %95 = vmatpush.msra.mxu0 0.0
    %96 = vmatpush.msra.mxu0 0.0
    %97 = vmatpush.msra.mxu0 0.0
    %98 = vmatpush.msra.mxu0 0.0
    %99 = vmatpush.msra.mxu0 0.0
    %100 = vmatpush.msra.mxu0 %v50
    %101 = vmatpush.msra.mxu0 %v49
    %102 = vmatpush.msra.mxu0 %v48
    %103 = vmatpush.msra.mxu0 %v47
    %104 = vmatpush.msra.mxu0 %v46
    %105 = vmatpush.msra.mxu0 %v45
    %106 = vmatpush.msra.mxu0 %v44
    %107 = vmatpush.msra.mxu0 %v43
    %108 = vmatmul.f32.gmra.mxu0 %v90
    %v109 = vpop.f32.mrf.mxu0
    %v110 = vadd.f32 0.0, %v109
    %111 = vdwg.mxu0
    %v112 = vrot.slane %v110, 4
    %v113 = vadd.f32 %v110, %v112
    %v114 = vrot.slane %v113, 2
    %v115 = vadd.f32 %v113, %v114
    %v116 = vrot.slane %v115, 1
    %v117 = vadd.f32 %v115, %v116
    %v118 = vrcp.pop 8.0
    %v119 = vmul.f32 8.0, %v118
    %v120 = vsub.f32 1.0, %v119
    %v121 = vmul.f32 %v118, %v120
    %v122 = vadd.f32 %v118, %v121
    %vm123 = vweird.f32 %v118
    %v124 = vsel %vm123, %v118, %v122
    %v125 = vmul.f32 %v117, %v124
    %v126 = vsub.f32 %v110, %v125
    %v127 = vmul.f32 %v126, %v126
    %v128 = vrot.slane %v127, 4
    %v129 = vadd.f32 %v127, %v128
    %v130 = vrot.slane %v129, 2
    %v131 = vadd.f32 %v129, %v130
    %v132 = vrot.slane %v131, 1
    %v133 = vadd.f32 %v131, %v132
    %v134 = vmul.f32 %v133, %v124
    %v135 = vadd.f32 %v134, 1e-05
    %v136 = vrsqrt.pop %v135
    %v137 = vmul.f32 %v136, %v135
    %v138 = vmul.f32 %v137, %v136
    %v139 = vmul.f32 0.5, %v138
    %v140 = vsub.f32 1.5, %v139
    %v141 = vmul.f32 %v136, %v140
    %vm142 = vweird.f32 %v135
    %vm143 = vweird.f32 %v136
    %vm144 = vmor %vm142, %vm143
    %v145 = vsel %vm144, %v136, %v141
    %v146 = vmul.f32 %v126, %v145
    %v147 = vperm.slane %v83, 0
    %v148 = vmul.f32 %v146, %v147
    %v149 = vperm.slane %v84, 0
    %v150 = vadd.f32 %v148, %v149
    %v151 = vmax.f32 %v150, 0.0
    %152 = vmatpush.msra.mxu0 %v66
    %153 = vmatpush.msra.mxu0 %v65
    %154 = vmatpush.msra.mxu0 %v64
    %155 = vmatpush.msra.mxu0 %v63
    %156 = vmatpush.msra.mxu0 %v62
    %157 = vmatpush.msra.mxu0 %v61
    %158 = vmatpush.msra.mxu0 %v60
    %159 = vmatpush.msra.mxu0 %v59
    %160 = vmatpush.msra.mxu0 %v58
    %161 = vmatpush.msra.mxu0 %v57
    %162 = vmatpush.msra.mxu0 %v56
    %163 = vmatpush.msra.mxu0 %v55
    %164 = vmatpush.msra.mxu0 %v54
    %165 = vmatpush.msra.mxu0 %v53
    %166 = vmatpush.msra.mxu0 %v52
    %167 = vmatpush.msra.mxu0 %v51
    %168 = vmatmul.f32.gmra.mxu0 %v151
    %v169 = vpop.f32.mrf.mxu0
    %v170 = vadd.f32 0.0, %v169
    %171 = vdwg.mxu0
    %v172 = vrot.slane %v170, 4
    %v173 = vadd.f32 %v170, %v172
    %v174 = vrot.slane %v173, 2
    %v175 = vadd.f32 %v173, %v174
    %v176 = vrot.slane %v175, 1
    %v177 = vadd.f32 %v175, %v176
    %v178 = vmul.f32 %v177, %v124
    %v179 = vsub.f32 %v170, %v178
    %v180 = vmul.f32 %v179, %v179
    %v181 = vrot.slane %v180, 4
    %v182 = vadd.f32 %v180, %v181
    %v183 = vrot.slane %v182, 2
    %v184 = vadd.f32 %v182, %v183
    %v185 = vrot.slane %v184, 1
    %v186 = vadd.f32 %v184, %v185
    %v187 = vmul.f32 %v186, %v124
    %v188 = vadd.f32 %v187, 1e-05
    %v189 = vrsqrt.pop %v188
    %v190 = vmul.f32 %v189, %v188
    %v191 = vmul.f32 %v190, %v189
    %v192 = vmul.f32 0.5, %v191
    %v193 = vsub.f32 1.5, %v192
    %v194 = vmul.f32 %v189, %v193
    %vm195 = vweird.f32 %v188
    %vm196 = vweird.f32 %v189
    %vm197 = vmor %vm195, %vm196
    %v198 = vsel %vm197, %v189, %v194
    %v199 = vmul.f32 %v179, %v198
    %v200 = vperm.slane %v85, 0
    %v201 = vmul.f32 %v199, %v200
    %v202 = vperm.slane %v86, 0
    %v203 = vadd.f32 %v201, %v202
    %v204 = vmax.f32 %v203, 0.0
    %v205 = vperm.slane %v87, 0
    %206 = vmatpush.msra.mxu0 %v82
    %207 = vmatpush.msra.mxu0 %v81
    %208 = vmatpush.msra.mxu0 %v80
    %209 = vmatpush.msra.mxu0 %v79
    %210 = vmatpush.msra.mxu0 %v78
    %211 = vmatpush.msra.mxu0 %v77
    %212 = vmatpush.msra.mxu0 %v76
    %213 = vmatpush.msra.mxu0 %v75
    %214 = vmatpush.msra.mxu0 %v74
    %215 = vmatpush.msra.mxu0 %v73
    %216 = vmatpush.msra.mxu0 %v72
    %217 = vmatpush.msra.mxu0 %v71
    %218 = vmatpush.msra.mxu0 %v70
    %219 = vmatpush.msra.mxu0 %v69
    %220 = vmatpush.msra.mxu0 %v68
    %221 = vmatpush.msra.mxu0 %v67
    %222 = vmatmul.f32.gmra.mxu0 %v204
    %v223 = vpop.f32.mrf.mxu0
    %v224 = vadd.f32 %v205, %v223
    %225 = vdwg.mxu0
    %vm226 = vcmask 48128
    %227 = vst.msk [vmem:[#allocation7] sm:$0xff] %vm226, %v224
    // Predicated region
    $region18: #{nn_forward.1} parent=1 // pred_check
      _
    $region19: #{nn_forward.1} parent=1 // pred_check_branch
      %229 = sbr.rel (0) target = $region21
    $region20: #{nn_forward.1} parent=1 // pred_region
      %231 = vsyncadd [#allocation4], 0
      %s233 = sshll.u32 [#allocation7], 4
      %s234 = int_to_ptr.vmem [resolvable:$true] %s233
      %s235 = sshll.u32 %s2, 4
      %s236 = int_to_ptr.hbm [resolvable:$true] %s235
      %238 = dma.vmem_to_hbm [thread:$0]  %s234, 128, %s236, [#allocation4]
    $region21: #{nn_forward.1} parent=1 // pred_fallthru
      _
    // Predicated region
    $region22: #{nn_forward.1} parent=1 // pred_check
      _
    $region23: #{nn_forward.1} parent=1 // pred_check_branch
      %240 = sbr.rel (0) target = $region25
    $region24: #{nn_forward.1} parent=1 // pred_region
      %242 = dma.done [#allocation4], 128
    $region25: #{nn_forward.1} parent=1 // pred_fallthru
      _
    %243 = vsyncpa [#allocation3], 1
    %244 = vsyncpa [#allocation6], 1
    %245 = vsyncpa [#allocation4], 1

</llo_original>
